<compile_context>
chip_gen: v6e
topology: v6e:2x2x1
jax: 0.10.0
libtpu: 0.0.40
codegen_flags: <defaults>
</compile_context>

<pallas_src>
import functools

import jax
import jax.numpy as jnp
from jax.experimental import pallas as pl
from jax.experimental.pallas import tpu as pltpu


def _fmix32(x):
    """murmur3 finalizer: good 32-bit avalanche, pure VPU ops (xor/shift/mul)."""
    x = x ^ (x >> jnp.uint32(16))
    x = x * jnp.uint32(0x85EBCA6B)
    x = x ^ (x >> jnp.uint32(13))
    x = x * jnp.uint32(0xC2B2AE35)
    x = x ^ (x >> jnp.uint32(16))
    return x


def _sample_kernel(seed_ref, sample_ref, *, total_cols, block_rows, block_cols):
    """Fill one (block_rows, block_cols) tile with U[0,1) float32 samples.

    seed_ref   : SMEM (1,) int32   -- scalar seed
    sample_ref : VMEM (block_rows, block_cols) float32
    """
    i = pl.program_id(0)
    j = pl.program_id(1)

    # Global element coordinates for this tile (tiling/core-invariant stream).
    r = jax.lax.broadcasted_iota(jnp.int32, (block_rows, block_cols), 0)
    c = jax.lax.broadcasted_iota(jnp.int32, (block_rows, block_cols), 1)
    grow = r + i * block_rows
    gcol = c + j * block_cols
    gidx = grow * total_cols + gcol  # unique per element

    ctr = jax.lax.bitcast_convert_type(gidx, jnp.uint32)
    seed = jax.lax.bitcast_convert_type(seed_ref[0], jnp.uint32)

    # Counter-based hash PRNG (two mixing rounds, seed folded in each round).
    x = ctr ^ (seed * jnp.uint32(0x9E3779B9))
    x = _fmix32(x + seed)
    x = _fmix32(x)

    # Mantissa trick: top 23 random bits -> float32 in [1, 2), then subtract 1.
    f_bits = (x >> jnp.uint32(9)) | jnp.uint32(0x3F800000)
    sample_ref[...] = (
        jax.lax.bitcast_convert_type(f_bits, jnp.float32) - jnp.float32(1.0)
    )


def _pick_block(dim, cap, align):
    """Largest divisor of `dim` that is <= cap and a multiple of `align`
    (falls back to the full dim, which is always a legal block)."""
    if dim <= cap:
        return dim
    b = cap - (cap % align) if cap % align else cap
    while b >= align:
        if dim % b == 0:
            return b
        b -= align
    return dim


def distribution_network_forward(size=(256, 512), seed=0,
                                 max_block_rows=512, max_block_cols=2048):
    """Pallas equivalent of DistributionNetwork.forward(size, device).

    Returns (samples, path_log_probs), each of shape `size`, float32.
    The log path-probability of U(0,1) is identically 0, so it is produced
    by the wrapper (no HBM writeback of constant zeros from the kernel).
    """
    s0, s1 = size
    bs0 = _pick_block(s0, max_block_rows, 8)
    bs1 = _pick_block(s1, max_block_cols, 128)
    grid = (s0 // bs0, s1 // bs1)

    seed_arr = jnp.asarray([seed], dtype=jnp.int32)
    kernel = functools.partial(
        _sample_kernel, total_cols=s1, block_rows=bs0, block_cols=bs1
    )

    samples = pl.pallas_call(
        kernel,
        grid=grid,
        out_shape=jax.ShapeDtypeStruct((s0, s1), jnp.float32),
        in_specs=[pl.BlockSpec(memory_space=pltpu.MemorySpace.SMEM)],
        out_specs=pl.BlockSpec((bs0, bs1), lambda i, j: (i, j)),
        compiler_params=pltpu.CompilerParams(
            dimension_semantics=("parallel", "parallel")
        ),
    )(seed_arr)

    path_log_probs = jnp.zeros((s0, s1), jnp.float32)
    return samples, path_log_probs


if __name__ == "__main__":
    key = jax.random.PRNGKey(0)
    # Deterministic scalar seed derived from PRNGKey(0).
    seed = int(jax.random.randint(key, (), 0, 2**31 - 1, dtype=jnp.int32))

    # Small "TensorSize"; reduced block caps so the demo exercises a 2x2 grid.
    size = (256, 512)
    samples, path_logp = distribution_network_forward(
        size=size, seed=seed, max_block_rows=128, max_block_cols=256
    )
    samples = jax.block_until_ready(samples)
    path_logp = jax.block_until_ready(path_logp)

    assert samples.shape == size and samples.dtype == jnp.float32
    assert path_logp.shape == size and path_logp.dtype == jnp.float32
    assert bool(jnp.all(jnp.isfinite(samples)))
    assert bool(jnp.all(samples >= 0.0)) and bool(jnp.all(samples < 1.0))
    assert bool(jnp.all(path_logp == 0.0))
    # Tiles must not replay the same random stream.
    assert not bool(jnp.array_equal(samples[:128, :256], samples[128:, :256]))
    assert not bool(jnp.array_equal(samples[:128, :256], samples[:128, 256:]))
    # Crude uniformity check (mean of 131072 U(0,1) draws).
    assert abs(float(jnp.mean(samples)) - 0.5) < 0.02

    print("KERNEL_OK")
</pallas_src>

<mosaic_0001>
module attributes {stable_mosaic.version = 11 : i64} {
  func.func @_sample_kernel(%arg0: i32, %arg1: i32, %arg2: memref<1xi32, #tpu.memory_space<smem>>, %arg3: memref<128x256xf32, #tpu.memory_space<vmem>>) attributes {dimension_semantics = [#tpu.dimension_semantics<parallel>, #tpu.dimension_semantics<parallel>], iteration_bounds = array<i64: 2, 2>, scalar_prefetch = 0 : i64, scratch_operands = 0 : i64, tpu.core_type = #tpu.core_type<tc>, window_params = [{transform_indices = @transform_0, window_bounds = array<i64: 1>}, {transform_indices = @transform_1, window_bounds = array<i64: 128, 256>}]} {
    %0 = tpu.iota {dimensions = array<i32: 0>} : vector<128x256xi32>
    %1 = tpu.iota {dimensions = array<i32: 1>} : vector<128x256xi32>
    %c128_i32 = arith.constant 128 : i32
    %2 = arith.muli %arg0, %c128_i32 : i32
    %3 = vector.broadcast %2 : i32 to vector<128x256xi32>
    %4 = arith.addi %0, %3 : vector<128x256xi32>
    %c256_i32 = arith.constant 256 : i32
    %5 = arith.muli %arg1, %c256_i32 : i32
    %6 = vector.broadcast %5 : i32 to vector<128x256xi32>
    %7 = arith.addi %1, %6 : vector<128x256xi32>
    %c512_i32 = arith.constant 512 : i32
    %8 = vector.broadcast %c512_i32 : i32 to vector<128x256xi32>
    %9 = arith.muli %4, %8 : vector<128x256xi32>
    %10 = arith.addi %9, %7 : vector<128x256xi32>
    %11 = tpu.bitcast %10 : vector<128x256xi32> -> vector<128x256xi32>
    %c0 = arith.constant 0 : index
    %12 = memref.load %arg2[%c0] : memref<1xi32, #tpu.memory_space<smem>>
    %13 = arith.bitcast %12 : i32 to i32
    %c-1640531527_i32 = arith.constant -1640531527 : i32
    %14 = arith.muli %13, %c-1640531527_i32 : i32
    %15 = vector.broadcast %14 : i32 to vector<128x256xi32>
    %16 = arith.xori %11, %15 : vector<128x256xi32>
    %17 = vector.broadcast %13 : i32 to vector<128x256xi32>
    %18 = arith.addi %16, %17 : vector<128x256xi32>
    %c16_i32 = arith.constant 16 : i32
    %19 = vector.broadcast %c16_i32 : i32 to vector<128x256xi32>
    %20 = arith.shrui %18, %19 : vector<128x256xi32>
    %21 = arith.xori %18, %20 : vector<128x256xi32>
    %c-2048144789_i32 = arith.constant -2048144789 : i32
    %22 = vector.broadcast %c-2048144789_i32 : i32 to vector<128x256xi32>
    %23 = arith.muli %21, %22 : vector<128x256xi32>
    %c13_i32 = arith.constant 13 : i32
    %24 = vector.broadcast %c13_i32 : i32 to vector<128x256xi32>
    %25 = arith.shrui %23, %24 : vector<128x256xi32>
    %26 = arith.xori %23, %25 : vector<128x256xi32>
    %c-1028477387_i32 = arith.constant -1028477387 : i32
    %27 = vector.broadcast %c-1028477387_i32 : i32 to vector<128x256xi32>
    %28 = arith.muli %26, %27 : vector<128x256xi32>
    %c16_i32_0 = arith.constant 16 : i32
    %29 = vector.broadcast %c16_i32_0 : i32 to vector<128x256xi32>
    %30 = arith.shrui %28, %29 : vector<128x256xi32>
    %31 = arith.xori %28, %30 : vector<128x256xi32>
    %c16_i32_1 = arith.constant 16 : i32
    %32 = vector.broadcast %c16_i32_1 : i32 to vector<128x256xi32>
    %33 = arith.shrui %31, %32 : vector<128x256xi32>
    %34 = arith.xori %31, %33 : vector<128x256xi32>
    %c-2048144789_i32_2 = arith.constant -2048144789 : i32
    %35 = vector.broadcast %c-2048144789_i32_2 : i32 to vector<128x256xi32>
    %36 = arith.muli %34, %35 : vector<128x256xi32>
    %c13_i32_3 = arith.constant 13 : i32
    %37 = vector.broadcast %c13_i32_3 : i32 to vector<128x256xi32>
    %38 = arith.shrui %36, %37 : vector<128x256xi32>
    %39 = arith.xori %36, %38 : vector<128x256xi32>
    %c-1028477387_i32_4 = arith.constant -1028477387 : i32
    %40 = vector.broadcast %c-1028477387_i32_4 : i32 to vector<128x256xi32>
    %41 = arith.muli %39, %40 : vector<128x256xi32>
    %c16_i32_5 = arith.constant 16 : i32
    %42 = vector.broadcast %c16_i32_5 : i32 to vector<128x256xi32>
    %43 = arith.shrui %41, %42 : vector<128x256xi32>
    %44 = arith.xori %41, %43 : vector<128x256xi32>
    %c9_i32 = arith.constant 9 : i32
    %45 = vector.broadcast %c9_i32 : i32 to vector<128x256xi32>
    %46 = arith.shrui %44, %45 : vector<128x256xi32>
    %c1065353216_i32 = arith.constant 1065353216 : i32
    %47 = vector.broadcast %c1065353216_i32 : i32 to vector<128x256xi32>
    %48 = arith.ori %46, %47 : vector<128x256xi32>
    %49 = tpu.bitcast %48 : vector<128x256xi32> -> vector<128x256xf32>
    %cst = arith.constant 1.000000e+00 : f32
    %50 = vector.broadcast %cst : f32 to vector<128x256xf32>
    %51 = arith.subf %49, %50 : vector<128x256xf32>
    %c0_6 = arith.constant 0 : index
    %c0_7 = arith.constant 0 : index
    %52 = vector.load %arg3[%c0_6, %c0_7] : memref<128x256xf32, #tpu.memory_space<vmem>>, vector<128x256xf32>
    tpu.vector_store %arg3[%c0_6, %c0_7], %51 {strides = array<i32>} : memref<128x256xf32, #tpu.memory_space<vmem>>, vector<128x256xf32>,
    return
  }
  func.func @transform_0(%arg0: i32, %arg1: i32) -> i32 {
    %c0_i32 = arith.constant 0 : i32
    %c0_i32_0 = arith.constant 0 : i32
    return %c0_i32 : i32
  }
  func.func @transform_1(%arg0: i32, %arg1: i32) -> (i32, i32) {
    %c0_i32 = arith.constant 0 : i32
    return %arg0, %arg1 : i32, i32
  }
}

</mosaic_0001>

<llo_original>
// kernel: tpu_custom_call.1
$region0: #{tpu_custom_call.1}
  #allocation0 [shape = 'u32[]', space=smem, size = 0x4, offset = 0x4, fixed_abs, tag = 'smem constant byte address 0x4 - core index']
  #allocation1 [shape = 'u32[144,128]{1,0:T(1,128)}', space=vmem, size = 0x12000, scoped, tag = 'internal scratch']
  #allocation2 [shape = 's32[1]{0:T(128)S(6)}', space=smem, size = 0x200, scoped, tag = 'scoped memory for tpu_custom_call.1']
  %s0 = inlined_call_operand.<no memory space> [shape: s32[1], index: 0, kind: input, shape index: {}]
  %s1 = inlined_call_operand.hbm [shape: f32[256,512], index: 1, kind: output, shape index: {}]
  %s2 = sld [smem:[#allocation0]]
  $region37: #{tpu_custom_call.1} parent=0
    _
  %s4 = ssub.s32 1, %s2
  %s5 = scalar_select 0, %s4, %s2
  %6 = sst [smem:[#allocation2]] %s0
  $region1: #{tpu_custom_call.1} parent=0
    #allocation3 [shape = 'u8[262144]{0}', space=vmem, size = 0x40000, scoped, tag = 'output window, operand 0']
    #allocation4 [shape = 's32[2]{0}', space=sflag, size = 0x8, scoped, tag = 'scoped memory for tpu_custom_call.1']
    %7 = vsyncpa [#allocation4], 0
    %s8 = scalar_lea.sflag [#allocation4], 1
    %9 = vsyncpa %s8, 0
    loop: start=0, step=1, limit=6
    $region2: #{tpu_custom_call.1} parent=1 // loop_pre_header
      _
    $region3: #{tpu_custom_call.1} parent=1 // loop_header
      %s11 = sphi 0, %s15
      %p12 = scmp.ge.s32.totalorder %s11, 6
      %s18 = sphi 0, %s30
      %s19 = sphi 0, %s26
      %s20 = sphi 0, %s18
      %s21 = sphi 0, %s19
      %s22 = sphi 0, %s20
      %s23 = sphi 0, %s21
      %s31 = sphi 0, %s31
      %s33 = sphi 0, %s31
      %s34 = sphi 0, %s33
      %s48 = sphi 0, %s34
      %s56 = sphi 0, %s58
      %s59 = sphi 0, %s56
      %s60 = sphi 0, %s59
      %s76 = sphi 0, %s60
    $region4: #{tpu_custom_call.1} parent=1 // loop_header_branch
      %14 = sbr.rel (%p12) target = $region8
    $region5: #{tpu_custom_call.1} parent=1 // loop_body
      %s16 = ssub.s32 %s11, 1
      %s17 = ssub.s32 %s11, 2
      %s24 = sadd.s32 1, %s19
      %p25 = scmp.ge.s32.totalorder %s24, 2
      %s26 = scalar_select %p25, 0, %s24
      %s27 = sadd.s32 1, %s18
      %s28 = scalar_select %p25, %s27, %s18
      %p29 = scmp.ge.s32.totalorder %s28, 2
      %s30 = scalar_select %p29, 0, %s28
      %s32 = sadd.s32 %s31, 1
      %p35 = scmp.eq.s32.totalorder %s11, 3
      %p36 = scmp.ne.s32.totalorder %s31, %s33
      %p37 = scmp.eq.s32.totalorder %s11, 0
      %p38 = por %p36, %p37
      %p39 = scmp.ne.s32.totalorder %s31, %s33
      %p40 = scmp.eq.s32.totalorder %s16, 3
      %p41 = por %p39, %p40
      %p42 = scmp.ne.s32.totalorder %s33, %s34
      %p43 = scmp.eq.s32.totalorder %s16, 0
      %p44 = por %p42, %p43
      %p45 = scmp.ne.s32.totalorder %s33, %s34
      %p46 = scmp.eq.s32.totalorder %s17, 3
      %p47 = por %p45, %p46
      %p49 = scmp.ne.s32.totalorder %s34, %s48
      %p50 = scmp.eq.s32.totalorder %s17, 0
      %p51 = por %p49, %p50
      %s52 = ssub.s32 %s18, %s30
      %s53 = ssub.s32 %s19, %s26
      %s54 = sor.u32 %s52, %s53
      %p55 = scmp.eq.s32.totalorder %s54, 0
      %s57 = sadd.s32 %s56, 1
      %s58 = scalar_select %p55, %s56, %s57
      %p61 = pneg %p55
      %p62 = scmp.eq.s32.totalorder %s11, 3
      %p63 = por %p61, %p62
      %p64 = scmp.ne.s32.totalorder %s56, %s59
      %p65 = scmp.eq.s32.totalorder %s11, 0
      %p66 = por %p64, %p65
      %p67 = scmp.ne.s32.totalorder %s56, %s59
      %p68 = scmp.eq.s32.totalorder %s16, 3
      %p69 = por %p67, %p68
      %p70 = scmp.ne.s32.totalorder %s59, %s60
      %p71 = scmp.eq.s32.totalorder %s16, 0
      %p72 = por %p70, %p71
      %p73 = scmp.ne.s32.totalorder %s59, %s60
      %p74 = scmp.eq.s32.totalorder %s17, 3
      %p75 = por %p73, %p74
      %p77 = scmp.ne.s32.totalorder %s60, %s76
      %p78 = scmp.eq.s32.totalorder %s17, 0
      %p79 = por %p77, %p78
      %p80 = scmp.le.s32.totalorder 1, %s11
      %p81 = scmp.lt.s32.totalorder %s11, 5
      %p82 = pnand %p80, %p81
      %p83 = pneg %p82
      // Predicated region
      $region9: #{tpu_custom_call.1} parent=5 // pred_check
        _
      $region10: #{tpu_custom_call.1} parent=5 // pred_check_branch
        %85 = sbr.rel (%p82) target = $region12
      $region11: #{tpu_custom_call.1} parent=5 // pred_region
        %s86 = ssub.s32 %s11, 1
        // Predicated region
        $region13: #{tpu_custom_call.1} parent=11 // pred_check
          %p87 = pneg %p44
        $region14: #{tpu_custom_call.1} parent=11 // pred_check_branch
          %89 = sbr.rel (%p87) target = $region16
        $region15: #{tpu_custom_call.1} parent=11 // pred_region
          _
        $region16: #{tpu_custom_call.1} parent=11 // pred_fallthru
          _
      $region12: #{tpu_custom_call.1} parent=5 // pred_fallthru
        _
      %p90 = scmp.lt.s32.totalorder %s11, 4
      // Predicated region
      $region17: #{tpu_custom_call.1} parent=5 // pred_check
        %p91 = pneg %p90
      $region18: #{tpu_custom_call.1} parent=5 // pred_check_branch
        %93 = sbr.rel (%p91) target = $region20
      $region19: #{tpu_custom_call.1} parent=5 // pred_region
        _
      $region20: #{tpu_custom_call.1} parent=5 // pred_fallthru
        _
      %p94 = scmp.le.s32.totalorder 1, %s11
      %p95 = scmp.lt.s32.totalorder %s11, 5
      %p96 = pnand %p94, %p95
      %p97 = pneg %p96
      // Predicated region
      $region21: #{tpu_custom_call.1} parent=5 // pred_check
        _
      $region22: #{tpu_custom_call.1} parent=5 // pred_check_branch
        %99 = sbr.rel (%p96) target = $region24
      $region23: #{tpu_custom_call.1} parent=5 // pred_region
        %s100 = ssub.s32 %s11, 1
        %p101 = pneg %p44
        %p102 = pneg %p41
        %p103 = pneg %p72
        %p104 = pneg %p69
        %s105 = sand.u32 %s59, 1
        %s106 = scalar_lea.sflag [#allocation4], %s105
        %s107 = sand.u32 %s59, 1
        %s108 = smul.addr %s107, 256
        %s109 = scalar_lea.vmem [#allocation3], %s108
        %s110 = smul.u32 16, %s20
        %s111 = smul.u32 2, %s21
        %v112 = vlaneseq
        %v113 = vshrl.u32 %v112, 7
        %v114 = vadd.s32 %v113, 8
        %v115 = vadd.s32 %v113, 16
        %v116 = vadd.s32 %v113, 24
        %v117 = vadd.s32 %v113, 32
        %v118 = vadd.s32 %v113, 40
        %v119 = vadd.s32 %v113, 48
        %v120 = vadd.s32 %v113, 56
        %v121 = vadd.s32 %v113, 64
        %v122 = vadd.s32 %v113, 72
        %v123 = vadd.s32 %v113, 80
        %v124 = vadd.s32 %v113, 88
        %v125 = vadd.s32 %v113, 96
        %v126 = vadd.s32 %v113, 104
        %v127 = vadd.s32 %v113, 112
        %v128 = vadd.s32 %v113, 120
        %v129 = vlaneseq
        %v130 = vand.u32 %v129, 127
        %v131 = vadd.s32 %v130, 128
        %s132 = smul.u32 %s20, 128
        %v133 = vstv %s132
        %v134 = vadd.s32 %v113, %v133
        %v135 = vadd.s32 %v114, %v133
        %v136 = vadd.s32 %v115, %v133
        %v137 = vadd.s32 %v116, %v133
        %v138 = vadd.s32 %v117, %v133
        %v139 = vadd.s32 %v118, %v133
        %v140 = vadd.s32 %v119, %v133
        %v141 = vadd.s32 %v120, %v133
        %v142 = vadd.s32 %v121, %v133
        %v143 = vadd.s32 %v122, %v133
        %v144 = vadd.s32 %v123, %v133
        %v145 = vadd.s32 %v124, %v133
        %v146 = vadd.s32 %v125, %v133
        %v147 = vadd.s32 %v126, %v133
        %v148 = vadd.s32 %v127, %v133
        %v149 = vadd.s32 %v128, %v133
        %s150 = smul.u32 %s21, 256
        %v151 = vstv %s150
        %v152 = vadd.s32 %v130, %v151
        %v153 = vadd.s32 %v131, %v151
        %v154 = vmul.u32 %v134, 512
        %v155 = vmul.u32 %v135, 512
        %v156 = vmul.u32 %v136, 512
        %v157 = vmul.u32 %v137, 512
        %v158 = vmul.u32 %v138, 512
        %v159 = vmul.u32 %v139, 512
        %v160 = vmul.u32 %v140, 512
        %v161 = vmul.u32 %v141, 512
        %v162 = vmul.u32 %v142, 512
        %v163 = vmul.u32 %v143, 512
        %v164 = vmul.u32 %v144, 512
        %v165 = vmul.u32 %v145, 512
        %v166 = vmul.u32 %v146, 512
        %v167 = vmul.u32 %v147, 512
        %v168 = vmul.u32 %v148, 512
        %v169 = vmul.u32 %v149, 512
        %v170 = vadd.s32 %v154, %v152
        %v171 = vadd.s32 %v154, %v153
        %v172 = vadd.s32 %v155, %v152
        %v173 = vadd.s32 %v155, %v153
        %v174 = vadd.s32 %v156, %v152
        %v175 = vadd.s32 %v156, %v153
        %v176 = vadd.s32 %v157, %v152
        %v177 = vadd.s32 %v157, %v153
        %v178 = vadd.s32 %v158, %v152
        %v179 = vadd.s32 %v158, %v153
        %v180 = vadd.s32 %v159, %v152
        %v181 = vadd.s32 %v159, %v153
        %v182 = vadd.s32 %v160, %v152
        %v183 = vadd.s32 %v160, %v153
        %v184 = vadd.s32 %v161, %v152
        %v185 = vadd.s32 %v161, %v153
        %v186 = vadd.s32 %v162, %v152
        %v187 = vadd.s32 %v162, %v153
        %v188 = vadd.s32 %v163, %v152
        %v189 = vadd.s32 %v163, %v153
        %v190 = vadd.s32 %v164, %v152
        %v191 = vadd.s32 %v164, %v153
        %v192 = vadd.s32 %v165, %v152
        %v193 = vadd.s32 %v165, %v153
        %v194 = vadd.s32 %v166, %v152
        %v195 = vadd.s32 %v166, %v153
        %v196 = vadd.s32 %v167, %v152
        %v197 = vadd.s32 %v167, %v153
        %v198 = vadd.s32 %v168, %v152
        %v199 = vadd.s32 %v168, %v153
        %v200 = vadd.s32 %v169, %v152
        %v201 = vadd.s32 %v169, %v153
        %s202 = sld [smem:[#allocation2]]
        %s203 = smul.u32 %s202, 2654435769
        %v204 = vstv %s203
        %v205 = vxor.u32 %v170, %v204
        %v206 = vxor.u32 %v171, %v204
        %v207 = vxor.u32 %v172, %v204
        %v208 = vxor.u32 %v173, %v204
        %v209 = vxor.u32 %v174, %v204
        %v210 = vxor.u32 %v175, %v204
        %v211 = vxor.u32 %v176, %v204
        %v212 = vxor.u32 %v177, %v204
        %v213 = vxor.u32 %v178, %v204
        %v214 = vxor.u32 %v179, %v204
        %v215 = vxor.u32 %v180, %v204
        %v216 = vxor.u32 %v181, %v204
        %v217 = vxor.u32 %v182, %v204
        %v218 = vxor.u32 %v183, %v204
        %v219 = vxor.u32 %v184, %v204
        %v220 = vxor.u32 %v185, %v204
        %v221 = vxor.u32 %v186, %v204
        %v222 = vxor.u32 %v187, %v204
        %v223 = vxor.u32 %v188, %v204
        %v224 = vxor.u32 %v189, %v204
        %v225 = vxor.u32 %v190, %v204
        %v226 = vxor.u32 %v191, %v204
        %v227 = vxor.u32 %v192, %v204
        %v228 = vxor.u32 %v193, %v204
        %v229 = vxor.u32 %v194, %v204
        %v230 = vxor.u32 %v195, %v204
        %v231 = vxor.u32 %v196, %v204
        %v232 = vxor.u32 %v197, %v204
        %v233 = vxor.u32 %v198, %v204
        %v234 = vxor.u32 %v199, %v204
        %v235 = vxor.u32 %v200, %v204
        %v236 = vxor.u32 %v201, %v204
        %v237 = vstv %s202
        %v238 = vadd.s32 %v205, %v237
        %v239 = vadd.s32 %v206, %v237
        %v240 = vadd.s32 %v207, %v237
        %v241 = vadd.s32 %v208, %v237
        %v242 = vadd.s32 %v209, %v237
        %v243 = vadd.s32 %v210, %v237
        %v244 = vadd.s32 %v211, %v237
        %v245 = vadd.s32 %v212, %v237
        %v246 = vadd.s32 %v213, %v237
        %v247 = vadd.s32 %v214, %v237
        %v248 = vadd.s32 %v215, %v237
        %v249 = vadd.s32 %v216, %v237
        %v250 = vadd.s32 %v217, %v237
        %v251 = vadd.s32 %v218, %v237
        %v252 = vadd.s32 %v219, %v237
        %v253 = vadd.s32 %v220, %v237
        %v254 = vadd.s32 %v221, %v237
        %v255 = vadd.s32 %v222, %v237
        %v256 = vadd.s32 %v223, %v237
        %v257 = vadd.s32 %v224, %v237
        %v258 = vadd.s32 %v225, %v237
        %v259 = vadd.s32 %v226, %v237
        %v260 = vadd.s32 %v227, %v237
        %v261 = vadd.s32 %v228, %v237
        %v262 = vadd.s32 %v229, %v237
        %v263 = vadd.s32 %v230, %v237
        %v264 = vadd.s32 %v231, %v237
        %v265 = vadd.s32 %v232, %v237
        %v266 = vadd.s32 %v233, %v237
        %v267 = vadd.s32 %v234, %v237
        %v268 = vadd.s32 %v235, %v237
        %v269 = vadd.s32 %v236, %v237
        %v270 = vshrl.u32 %v238, 16
        %v271 = vshrl.u32 %v239, 16
        %v272 = vshrl.u32 %v240, 16
        %v273 = vshrl.u32 %v241, 16
        %v274 = vshrl.u32 %v242, 16
        %v275 = vshrl.u32 %v243, 16
        %v276 = vshrl.u32 %v244, 16
        %v277 = vshrl.u32 %v245, 16
        %v278 = vshrl.u32 %v246, 16
        %v279 = vshrl.u32 %v247, 16
        %v280 = vshrl.u32 %v248, 16
        %v281 = vshrl.u32 %v249, 16
        %v282 = vshrl.u32 %v250, 16
        %v283 = vshrl.u32 %v251, 16
        %v284 = vshrl.u32 %v252, 16
        %v285 = vshrl.u32 %v253, 16
        %v286 = vshrl.u32 %v254, 16
        %v287 = vshrl.u32 %v255, 16
        %v288 = vshrl.u32 %v256, 16
        %v289 = vshrl.u32 %v257, 16
        %v290 = vshrl.u32 %v258, 16
        %v291 = vshrl.u32 %v259, 16
        %v292 = vshrl.u32 %v260, 16
        %v293 = vshrl.u32 %v261, 16
        %v294 = vshrl.u32 %v262, 16
        %v295 = vshrl.u32 %v263, 16
        %v296 = vshrl.u32 %v264, 16
        %v297 = vshrl.u32 %v265, 16
        %v298 = vshrl.u32 %v266, 16
        %v299 = vshrl.u32 %v267, 16
        %v300 = vshrl.u32 %v268, 16
        %v301 = vshrl.u32 %v269, 16
        %v302 = vxor.u32 %v238, %v270
        %v303 = vxor.u32 %v239, %v271
        %v304 = vxor.u32 %v240, %v272
        %v305 = vxor.u32 %v241, %v273
        %v306 = vxor.u32 %v242, %v274
        %v307 = vxor.u32 %v243, %v275
        %v308 = vxor.u32 %v244, %v276
        %v309 = vxor.u32 %v245, %v277
        %v310 = vxor.u32 %v246, %v278
        %v311 = vxor.u32 %v247, %v279
        %v312 = vxor.u32 %v248, %v280
        %v313 = vxor.u32 %v249, %v281
        %v314 = vxor.u32 %v250, %v282
        %v315 = vxor.u32 %v251, %v283
        %v316 = vxor.u32 %v252, %v284
        %v317 = vxor.u32 %v253, %v285
        %v318 = vxor.u32 %v254, %v286
        %v319 = vxor.u32 %v255, %v287
        %v320 = vxor.u32 %v256, %v288
        %v321 = vxor.u32 %v257, %v289
        %v322 = vxor.u32 %v258, %v290
        %v323 = vxor.u32 %v259, %v291
        %v324 = vxor.u32 %v260, %v292
        %v325 = vxor.u32 %v261, %v293
        %v326 = vxor.u32 %v262, %v294
        %v327 = vxor.u32 %v263, %v295
        %v328 = vxor.u32 %v264, %v296
        %v329 = vxor.u32 %v265, %v297
        %v330 = vxor.u32 %v266, %v298
        %v331 = vxor.u32 %v267, %v299
        %v332 = vxor.u32 %v268, %v300
        %v333 = vxor.u32 %v269, %v301
        %v334 = vmul.u32 %v302, 2246822507
        %v335 = vmul.u32 %v303, 2246822507
        %v336 = vmul.u32 %v304, 2246822507
        %v337 = vmul.u32 %v305, 2246822507
        %v338 = vmul.u32 %v306, 2246822507
        %v339 = vmul.u32 %v307, 2246822507
        %v340 = vmul.u32 %v308, 2246822507
        %v341 = vmul.u32 %v309, 2246822507
        %v342 = vmul.u32 %v310, 2246822507
        %v343 = vmul.u32 %v311, 2246822507
        %v344 = vmul.u32 %v312, 2246822507
        %v345 = vmul.u32 %v313, 2246822507
        %v346 = vmul.u32 %v314, 2246822507
        %v347 = vmul.u32 %v315, 2246822507
        %v348 = vmul.u32 %v316, 2246822507
        %v349 = vmul.u32 %v317, 2246822507
        %v350 = vmul.u32 %v318, 2246822507
        %v351 = vmul.u32 %v319, 2246822507
        %v352 = vmul.u32 %v320, 2246822507
        %v353 = vmul.u32 %v321, 2246822507
        %v354 = vmul.u32 %v322, 2246822507
        %v355 = vmul.u32 %v323, 2246822507
        %v356 = vmul.u32 %v324, 2246822507
        %v357 = vmul.u32 %v325, 2246822507
        %v358 = vmul.u32 %v326, 2246822507
        %v359 = vmul.u32 %v327, 2246822507
        %v360 = vmul.u32 %v328, 2246822507
        %v361 = vmul.u32 %v329, 2246822507
        %v362 = vmul.u32 %v330, 2246822507
        %v363 = vmul.u32 %v331, 2246822507
        %v364 = vmul.u32 %v332, 2246822507
        %v365 = vmul.u32 %v333, 2246822507
        %v366 = vshrl.u32 %v334, 13
        %v367 = vshrl.u32 %v335, 13
        %v368 = vshrl.u32 %v336, 13
        %v369 = vshrl.u32 %v337, 13
        %v370 = vshrl.u32 %v338, 13
        %v371 = vshrl.u32 %v339, 13
        %v372 = vshrl.u32 %v340, 13
        %v373 = vshrl.u32 %v341, 13
        %v374 = vshrl.u32 %v342, 13
        %v375 = vshrl.u32 %v343, 13
        %v376 = vshrl.u32 %v344, 13
        %v377 = vshrl.u32 %v345, 13
        %v378 = vshrl.u32 %v346, 13
        %v379 = vshrl.u32 %v347, 13
        %v380 = vshrl.u32 %v348, 13
        %v381 = vshrl.u32 %v349, 13
        %v382 = vshrl.u32 %v350, 13
        %v383 = vshrl.u32 %v351, 13
        %v384 = vshrl.u32 %v352, 13
        %v385 = vshrl.u32 %v353, 13
        %v386 = vshrl.u32 %v354, 13
        %v387 = vshrl.u32 %v355, 13
        %v388 = vshrl.u32 %v356, 13
        %v389 = vshrl.u32 %v357, 13
        %v390 = vshrl.u32 %v358, 13
        %v391 = vshrl.u32 %v359, 13
        %v392 = vshrl.u32 %v360, 13
        %v393 = vshrl.u32 %v361, 13
        %v394 = vshrl.u32 %v362, 13
        %v395 = vshrl.u32 %v363, 13
        %v396 = vshrl.u32 %v364, 13
        %v397 = vshrl.u32 %v365, 13
        %v398 = vxor.u32 %v334, %v366
        %v399 = vxor.u32 %v335, %v367
        %v400 = vxor.u32 %v336, %v368
        %v401 = vxor.u32 %v337, %v369
        %v402 = vxor.u32 %v338, %v370
        %v403 = vxor.u32 %v339, %v371
        %v404 = vxor.u32 %v340, %v372
        %v405 = vxor.u32 %v341, %v373
        %v406 = vxor.u32 %v342, %v374
        %v407 = vxor.u32 %v343, %v375
        %v408 = vxor.u32 %v344, %v376
        %v409 = vxor.u32 %v345, %v377
        %v410 = vxor.u32 %v346, %v378
        %v411 = vxor.u32 %v347, %v379
        %v412 = vxor.u32 %v348, %v380
        %v413 = vxor.u32 %v349, %v381
        %v414 = vxor.u32 %v350, %v382
        %v415 = vxor.u32 %v351, %v383
        %v416 = vxor.u32 %v352, %v384
        %v417 = vxor.u32 %v353, %v385
        %v418 = vxor.u32 %v354, %v386
        %v419 = vxor.u32 %v355, %v387
        %v420 = vxor.u32 %v356, %v388
        %v421 = vxor.u32 %v357, %v389
        %v422 = vxor.u32 %v358, %v390
        %v423 = vxor.u32 %v359, %v391
        %v424 = vxor.u32 %v360, %v392
        %v425 = vxor.u32 %v361, %v393
        %v426 = vxor.u32 %v362, %v394
        %v427 = vxor.u32 %v363, %v395
        %v428 = vxor.u32 %v364, %v396
        %v429 = vxor.u32 %v365, %v397
        %v430 = vmul.u32 %v398, 3266489909
        %v431 = vmul.u32 %v399, 3266489909
        %v432 = vmul.u32 %v400, 3266489909
        %v433 = vmul.u32 %v401, 3266489909
        %v434 = vmul.u32 %v402, 3266489909
        %v435 = vmul.u32 %v403, 3266489909
        %v436 = vmul.u32 %v404, 3266489909
        %v437 = vmul.u32 %v405, 3266489909
        %v438 = vmul.u32 %v406, 3266489909
        %v439 = vmul.u32 %v407, 3266489909
        %v440 = vmul.u32 %v408, 3266489909
        %v441 = vmul.u32 %v409, 3266489909
        %v442 = vmul.u32 %v410, 3266489909
        %v443 = vmul.u32 %v411, 3266489909
        %v444 = vmul.u32 %v412, 3266489909
        %v445 = vmul.u32 %v413, 3266489909
        %v446 = vmul.u32 %v414, 3266489909
        %v447 = vmul.u32 %v415, 3266489909
        %v448 = vmul.u32 %v416, 3266489909
        %v449 = vmul.u32 %v417, 3266489909
        %v450 = vmul.u32 %v418, 3266489909
        %v451 = vmul.u32 %v419, 3266489909
        %v452 = vmul.u32 %v420, 3266489909
        %v453 = vmul.u32 %v421, 3266489909
        %v454 = vmul.u32 %v422, 3266489909
        %v455 = vmul.u32 %v423, 3266489909
        %v456 = vmul.u32 %v424, 3266489909
        %v457 = vmul.u32 %v425, 3266489909
        %v458 = vmul.u32 %v426, 3266489909
        %v459 = vmul.u32 %v427, 3266489909
        %v460 = vmul.u32 %v428, 3266489909
        %v461 = vmul.u32 %v429, 3266489909
        %v462 = vshrl.u32 %v430, 16
        %v463 = vshrl.u32 %v431, 16
        %v464 = vshrl.u32 %v432, 16
        %v465 = vshrl.u32 %v433, 16
        %v466 = vshrl.u32 %v434, 16
        %v467 = vshrl.u32 %v435, 16
        %v468 = vshrl.u32 %v436, 16
        %v469 = vshrl.u32 %v437, 16
        %v470 = vshrl.u32 %v438, 16
        %v471 = vshrl.u32 %v439, 16
        %v472 = vshrl.u32 %v440, 16
        %v473 = vshrl.u32 %v441, 16
        %v474 = vshrl.u32 %v442, 16
        %v475 = vshrl.u32 %v443, 16
        %v476 = vshrl.u32 %v444, 16
        %v477 = vshrl.u32 %v445, 16
        %v478 = vshrl.u32 %v446, 16
        %v479 = vshrl.u32 %v447, 16
        %v480 = vshrl.u32 %v448, 16
        %v481 = vshrl.u32 %v449, 16
        %v482 = vshrl.u32 %v450, 16
        %v483 = vshrl.u32 %v451, 16
        %v484 = vshrl.u32 %v452, 16
        %v485 = vshrl.u32 %v453, 16
        %v486 = vshrl.u32 %v454, 16
        %v487 = vshrl.u32 %v455, 16
        %v488 = vshrl.u32 %v456, 16
        %v489 = vshrl.u32 %v457, 16
        %v490 = vshrl.u32 %v458, 16
        %v491 = vshrl.u32 %v459, 16
        %v492 = vshrl.u32 %v460, 16
        %v493 = vshrl.u32 %v461, 16
        %v494 = vxor.u32 %v430, %v462
        %v495 = vxor.u32 %v431, %v463
        %v496 = vxor.u32 %v432, %v464
        %v497 = vxor.u32 %v433, %v465
        %v498 = vxor.u32 %v434, %v466
        %v499 = vxor.u32 %v435, %v467
        %v500 = vxor.u32 %v436, %v468
        %v501 = vxor.u32 %v437, %v469
        %v502 = vxor.u32 %v438, %v470
        %v503 = vxor.u32 %v439, %v471
        %v504 = vxor.u32 %v440, %v472
        %v505 = vxor.u32 %v441, %v473
        %v506 = vxor.u32 %v442, %v474
        %v507 = vxor.u32 %v443, %v475
        %v508 = vxor.u32 %v444, %v476
        %v509 = vxor.u32 %v445, %v477
        %v510 = vxor.u32 %v446, %v478
        %v511 = vxor.u32 %v447, %v479
        %v512 = vxor.u32 %v448, %v480
        %v513 = vxor.u32 %v449, %v481
        %v514 = vxor.u32 %v450, %v482
        %v515 = vxor.u32 %v451, %v483
        %v516 = vxor.u32 %v452, %v484
        %v517 = vxor.u32 %v453, %v485
        %v518 = vxor.u32 %v454, %v486
        %v519 = vxor.u32 %v455, %v487
        %v520 = vxor.u32 %v456, %v488
        %v521 = vxor.u32 %v457, %v489
        %v522 = vxor.u32 %v458, %v490
        %v523 = vxor.u32 %v459, %v491
        %v524 = vxor.u32 %v460, %v492
        %v525 = vxor.u32 %v461, %v493
        %v526 = vshrl.u32 %v494, 16
        %v527 = vshrl.u32 %v495, 16
        %v528 = vshrl.u32 %v496, 16
        %v529 = vshrl.u32 %v497, 16
        %v530 = vshrl.u32 %v498, 16
        %v531 = vshrl.u32 %v499, 16
        %v532 = vshrl.u32 %v500, 16
        %v533 = vshrl.u32 %v501, 16
        %v534 = vshrl.u32 %v502, 16
        %v535 = vshrl.u32 %v503, 16
        %v536 = vshrl.u32 %v504, 16
        %v537 = vshrl.u32 %v505, 16
        %v538 = vshrl.u32 %v506, 16
        %v539 = vshrl.u32 %v507, 16
        %v540 = vshrl.u32 %v508, 16
        %v541 = vshrl.u32 %v509, 16
        %v542 = vshrl.u32 %v510, 16
        %v543 = vshrl.u32 %v511, 16
        %v544 = vshrl.u32 %v512, 16
        %v545 = vshrl.u32 %v513, 16
        %v546 = vshrl.u32 %v514, 16
        %v547 = vshrl.u32 %v515, 16
        %v548 = vshrl.u32 %v516, 16
        %v549 = vshrl.u32 %v517, 16
        %v550 = vshrl.u32 %v518, 16
        %v551 = vshrl.u32 %v519, 16
        %v552 = vshrl.u32 %v520, 16
        %v553 = vshrl.u32 %v521, 16
        %v554 = vshrl.u32 %v522, 16
        %v555 = vshrl.u32 %v523, 16
        %v556 = vshrl.u32 %v524, 16
        %v557 = vshrl.u32 %v525, 16
        %v558 = vxor.u32 %v494, %v526
        %v559 = vxor.u32 %v495, %v527
        %v560 = vxor.u32 %v496, %v528
        %v561 = vxor.u32 %v497, %v529
        %v562 = vxor.u32 %v498, %v530
        %v563 = vxor.u32 %v499, %v531
        %v564 = vxor.u32 %v500, %v532
        %v565 = vxor.u32 %v501, %v533
        %v566 = vxor.u32 %v502, %v534
        %v567 = vxor.u32 %v503, %v535
        %v568 = vxor.u32 %v504, %v536
        %v569 = vxor.u32 %v505, %v537
        %v570 = vxor.u32 %v506, %v538
        %v571 = vxor.u32 %v507, %v539
        %v572 = vxor.u32 %v508, %v540
        %v573 = vxor.u32 %v509, %v541
        %v574 = vxor.u32 %v510, %v542
        %v575 = vxor.u32 %v511, %v543
        %v576 = vxor.u32 %v512, %v544
        %v577 = vxor.u32 %v513, %v545
        %v578 = vxor.u32 %v514, %v546
        %v579 = vxor.u32 %v515, %v547
        %v580 = vxor.u32 %v516, %v548
        %v581 = vxor.u32 %v517, %v549
        %v582 = vxor.u32 %v518, %v550
        %v583 = vxor.u32 %v519, %v551
        %v584 = vxor.u32 %v520, %v552
        %v585 = vxor.u32 %v521, %v553
        %v586 = vxor.u32 %v522, %v554
        %v587 = vxor.u32 %v523, %v555
        %v588 = vxor.u32 %v524, %v556
        %v589 = vxor.u32 %v525, %v557
        %v590 = vmul.u32 %v558, 2246822507
        %v591 = vmul.u32 %v559, 2246822507
        %v592 = vmul.u32 %v560, 2246822507
        %v593 = vmul.u32 %v561, 2246822507
        %v594 = vmul.u32 %v562, 2246822507
        %v595 = vmul.u32 %v563, 2246822507
        %v596 = vmul.u32 %v564, 2246822507
        %v597 = vmul.u32 %v565, 2246822507
        %v598 = vmul.u32 %v566, 2246822507
        %v599 = vmul.u32 %v567, 2246822507
        %v600 = vmul.u32 %v568, 2246822507
        %v601 = vmul.u32 %v569, 2246822507
        %v602 = vmul.u32 %v570, 2246822507
        %v603 = vmul.u32 %v571, 2246822507
        %v604 = vmul.u32 %v572, 2246822507
        %v605 = vmul.u32 %v573, 2246822507
        %v606 = vmul.u32 %v574, 2246822507
        %v607 = vmul.u32 %v575, 2246822507
        %v608 = vmul.u32 %v576, 2246822507
        %v609 = vmul.u32 %v577, 2246822507
        %v610 = vmul.u32 %v578, 2246822507
        %v611 = vmul.u32 %v579, 2246822507
        %v612 = vmul.u32 %v580, 2246822507
        %v613 = vmul.u32 %v581, 2246822507
        %v614 = vmul.u32 %v582, 2246822507
        %v615 = vmul.u32 %v583, 2246822507
        %v616 = vmul.u32 %v584, 2246822507
        %v617 = vmul.u32 %v585, 2246822507
        %v618 = vmul.u32 %v586, 2246822507
        %v619 = vmul.u32 %v587, 2246822507
        %v620 = vmul.u32 %v588, 2246822507
        %v621 = vmul.u32 %v589, 2246822507
        %v622 = vshrl.u32 %v590, 13
        %v623 = vshrl.u32 %v591, 13
        %v624 = vshrl.u32 %v592, 13
        %v625 = vshrl.u32 %v593, 13
        %v626 = vshrl.u32 %v594, 13
        %v627 = vshrl.u32 %v595, 13
        %v628 = vshrl.u32 %v596, 13
        %v629 = vshrl.u32 %v597, 13
        %v630 = vshrl.u32 %v598, 13
        %v631 = vshrl.u32 %v599, 13
        %v632 = vshrl.u32 %v600, 13
        %v633 = vshrl.u32 %v601, 13
        %v634 = vshrl.u32 %v602, 13
        %v635 = vshrl.u32 %v603, 13
        %v636 = vshrl.u32 %v604, 13
        %v637 = vshrl.u32 %v605, 13
        %v638 = vshrl.u32 %v606, 13
        %v639 = vshrl.u32 %v607, 13
        %v640 = vshrl.u32 %v608, 13
        %v641 = vshrl.u32 %v609, 13
        %v642 = vshrl.u32 %v610, 13
        %v643 = vshrl.u32 %v611, 13
        %v644 = vshrl.u32 %v612, 13
        %v645 = vshrl.u32 %v613, 13
        %v646 = vshrl.u32 %v614, 13
        %v647 = vshrl.u32 %v615, 13
        %v648 = vshrl.u32 %v616, 13
        %v649 = vshrl.u32 %v617, 13
        %v650 = vshrl.u32 %v618, 13
        %v651 = vshrl.u32 %v619, 13
        %v652 = vshrl.u32 %v620, 13
        %v653 = vshrl.u32 %v621, 13
        %v654 = vxor.u32 %v590, %v622
        %v655 = vxor.u32 %v591, %v623
        %v656 = vxor.u32 %v592, %v624
        %v657 = vxor.u32 %v593, %v625
        %v658 = vxor.u32 %v594, %v626
        %v659 = vxor.u32 %v595, %v627
        %v660 = vxor.u32 %v596, %v628
        %v661 = vxor.u32 %v597, %v629
        %v662 = vxor.u32 %v598, %v630
        %v663 = vxor.u32 %v599, %v631
        %v664 = vxor.u32 %v600, %v632
        %v665 = vxor.u32 %v601, %v633
        %v666 = vxor.u32 %v602, %v634
        %v667 = vxor.u32 %v603, %v635
        %v668 = vxor.u32 %v604, %v636
        %v669 = vxor.u32 %v605, %v637
        %v670 = vxor.u32 %v606, %v638
        %v671 = vxor.u32 %v607, %v639
        %v672 = vxor.u32 %v608, %v640
        %v673 = vxor.u32 %v609, %v641
        %v674 = vxor.u32 %v610, %v642
        %v675 = vxor.u32 %v611, %v643
        %v676 = vxor.u32 %v612, %v644
        %v677 = vxor.u32 %v613, %v645
        %v678 = vxor.u32 %v614, %v646
        %v679 = vxor.u32 %v615, %v647
        %v680 = vxor.u32 %v616, %v648
        %v681 = vxor.u32 %v617, %v649
        %v682 = vxor.u32 %v618, %v650
        %v683 = vxor.u32 %v619, %v651
        %v684 = vxor.u32 %v620, %v652
        %v685 = vxor.u32 %v621, %v653
        %v686 = vmul.u32 %v654, 3266489909
        %v687 = vmul.u32 %v655, 3266489909
        %v688 = vmul.u32 %v656, 3266489909
        %v689 = vmul.u32 %v657, 3266489909
        %v690 = vmul.u32 %v658, 3266489909
        %v691 = vmul.u32 %v659, 3266489909
        %v692 = vmul.u32 %v660, 3266489909
        %v693 = vmul.u32 %v661, 3266489909
        %v694 = vmul.u32 %v662, 3266489909
        %v695 = vmul.u32 %v663, 3266489909
        %v696 = vmul.u32 %v664, 3266489909
        %v697 = vmul.u32 %v665, 3266489909
        %v698 = vmul.u32 %v666, 3266489909
        %v699 = vmul.u32 %v667, 3266489909
        %v700 = vmul.u32 %v668, 3266489909
        %v701 = vmul.u32 %v669, 3266489909
        %v702 = vmul.u32 %v670, 3266489909
        %v703 = vmul.u32 %v671, 3266489909
        %v704 = vmul.u32 %v672, 3266489909
        %v705 = vmul.u32 %v673, 3266489909
        %v706 = vmul.u32 %v674, 3266489909
        %v707 = vmul.u32 %v675, 3266489909
        %v708 = vmul.u32 %v676, 3266489909
        %v709 = vmul.u32 %v677, 3266489909
        %v710 = vmul.u32 %v678, 3266489909
        %v711 = vmul.u32 %v679, 3266489909
        %v712 = vmul.u32 %v680, 3266489909
        %v713 = vmul.u32 %v681, 3266489909
        %v714 = vmul.u32 %v682, 3266489909
        %v715 = vmul.u32 %v683, 3266489909
        %v716 = vmul.u32 %v684, 3266489909
        %v717 = vmul.u32 %v685, 3266489909
        %v718 = vshrl.u32 %v686, 16
        %v719 = vshrl.u32 %v687, 16
        %v720 = vshrl.u32 %v688, 16
        %v721 = vshrl.u32 %v689, 16
        %v722 = vshrl.u32 %v690, 16
        %v723 = vshrl.u32 %v691, 16
        %v724 = vshrl.u32 %v692, 16
        %v725 = vshrl.u32 %v693, 16
        %v726 = vshrl.u32 %v694, 16
        %v727 = vshrl.u32 %v695, 16
        %v728 = vshrl.u32 %v696, 16
        %v729 = vshrl.u32 %v697, 16
        %v730 = vshrl.u32 %v698, 16
        %v731 = vshrl.u32 %v699, 16
        %v732 = vshrl.u32 %v700, 16
        %v733 = vshrl.u32 %v701, 16
        %v734 = vshrl.u32 %v702, 16
        %v735 = vshrl.u32 %v703, 16
        %v736 = vshrl.u32 %v704, 16
        %v737 = vshrl.u32 %v705, 16
        %v738 = vshrl.u32 %v706, 16
        %v739 = vshrl.u32 %v707, 16
        %v740 = vshrl.u32 %v708, 16
        %v741 = vshrl.u32 %v709, 16
        %v742 = vshrl.u32 %v710, 16
        %v743 = vshrl.u32 %v711, 16
        %v744 = vshrl.u32 %v712, 16
        %v745 = vshrl.u32 %v713, 16
        %v746 = vshrl.u32 %v714, 16
        %v747 = vshrl.u32 %v715, 16
        %v748 = vshrl.u32 %v716, 16
        %v749 = vshrl.u32 %v717, 16
        %v750 = vxor.u32 %v686, %v718
        %v751 = vxor.u32 %v687, %v719
        %v752 = vxor.u32 %v688, %v720
        %v753 = vxor.u32 %v689, %v721
        %v754 = vxor.u32 %v690, %v722
        %v755 = vxor.u32 %v691, %v723
        %v756 = vxor.u32 %v692, %v724
        %v757 = vxor.u32 %v693, %v725
        %v758 = vxor.u32 %v694, %v726
        %v759 = vxor.u32 %v695, %v727
        %v760 = vxor.u32 %v696, %v728
        %v761 = vxor.u32 %v697, %v729
        %v762 = vxor.u32 %v698, %v730
        %v763 = vxor.u32 %v699, %v731
        %v764 = vxor.u32 %v700, %v732
        %v765 = vxor.u32 %v701, %v733
        %v766 = vxor.u32 %v702, %v734
        %v767 = vxor.u32 %v703, %v735
        %v768 = vxor.u32 %v704, %v736
        %v769 = vxor.u32 %v705, %v737
        %v770 = vxor.u32 %v706, %v738
        %v771 = vxor.u32 %v707, %v739
        %v772 = vxor.u32 %v708, %v740
        %v773 = vxor.u32 %v709, %v741
        %v774 = vxor.u32 %v710, %v742
        %v775 = vxor.u32 %v711, %v743
        %v776 = vxor.u32 %v712, %v744
        %v777 = vxor.u32 %v713, %v745
        %v778 = vxor.u32 %v714, %v746
        %v779 = vxor.u32 %v715, %v747
        %v780 = vxor.u32 %v716, %v748
        %v781 = vxor.u32 %v717, %v749
        %v782 = vshrl.u32 %v750, 9
        %v783 = vshrl.u32 %v751, 9
        %v784 = vshrl.u32 %v752, 9
        %v785 = vshrl.u32 %v753, 9
        %v786 = vshrl.u32 %v754, 9
        %v787 = vshrl.u32 %v755, 9
        %v788 = vshrl.u32 %v756, 9
        %v789 = vshrl.u32 %v757, 9
        %v790 = vshrl.u32 %v758, 9
        %v791 = vshrl.u32 %v759, 9
        %v792 = vshrl.u32 %v760, 9
        %v793 = vshrl.u32 %v761, 9
        %v794 = vshrl.u32 %v762, 9
        %v795 = vshrl.u32 %v763, 9
        %v796 = vshrl.u32 %v764, 9
        %v797 = vshrl.u32 %v765, 9
        %v798 = vshrl.u32 %v766, 9
        %v799 = vshrl.u32 %v767, 9
        %v800 = vshrl.u32 %v768, 9
        %v801 = vshrl.u32 %v769, 9
        %v802 = vshrl.u32 %v770, 9
        %v803 = vshrl.u32 %v771, 9
        %v804 = vshrl.u32 %v772, 9
        %v805 = vshrl.u32 %v773, 9
        %v806 = vshrl.u32 %v774, 9
        %v807 = vshrl.u32 %v775, 9
        %v808 = vshrl.u32 %v776, 9
        %v809 = vshrl.u32 %v777, 9
        %v810 = vshrl.u32 %v778, 9
        %v811 = vshrl.u32 %v779, 9
        %v812 = vshrl.u32 %v780, 9
        %v813 = vshrl.u32 %v781, 9
        %v814 = vor.u32 %v782, 1065353216
        %v815 = vor.u32 %v783, 1065353216
        %v816 = vor.u32 %v784, 1065353216
        %v817 = vor.u32 %v785, 1065353216
        %v818 = vor.u32 %v786, 1065353216
        %v819 = vor.u32 %v787, 1065353216
        %v820 = vor.u32 %v788, 1065353216
        %v821 = vor.u32 %v789, 1065353216
        %v822 = vor.u32 %v790, 1065353216
        %v823 = vor.u32 %v791, 1065353216
        %v824 = vor.u32 %v792, 1065353216
        %v825 = vor.u32 %v793, 1065353216
        %v826 = vor.u32 %v794, 1065353216
        %v827 = vor.u32 %v795, 1065353216
        %v828 = vor.u32 %v796, 1065353216
        %v829 = vor.u32 %v797, 1065353216
        %v830 = vor.u32 %v798, 1065353216
        %v831 = vor.u32 %v799, 1065353216
        %v832 = vor.u32 %v800, 1065353216
        %v833 = vor.u32 %v801, 1065353216
        %v834 = vor.u32 %v802, 1065353216
        %v835 = vor.u32 %v803, 1065353216
        %v836 = vor.u32 %v804, 1065353216
        %v837 = vor.u32 %v805, 1065353216
        %v838 = vor.u32 %v806, 1065353216
        %v839 = vor.u32 %v807, 1065353216
        %v840 = vor.u32 %v808, 1065353216
        %v841 = vor.u32 %v809, 1065353216
        %v842 = vor.u32 %v810, 1065353216
        %v843 = vor.u32 %v811, 1065353216
        %v844 = vor.u32 %v812, 1065353216
        %v845 = vor.u32 %v813, 1065353216
        %v878 = vsub.f32 %v814, 1.0
        %v879 = vsub.f32 %v815, 1.0
        %v880 = vsub.f32 %v816, 1.0
        %v881 = vsub.f32 %v817, 1.0
        %v882 = vsub.f32 %v818, 1.0
        %v883 = vsub.f32 %v819, 1.0
        %v884 = vsub.f32 %v820, 1.0
        %v885 = vsub.f32 %v821, 1.0
        %v886 = vsub.f32 %v822, 1.0
        %v887 = vsub.f32 %v823, 1.0
        %v888 = vsub.f32 %v824, 1.0
        %v889 = vsub.f32 %v825, 1.0
        %v890 = vsub.f32 %v826, 1.0
        %v891 = vsub.f32 %v827, 1.0
        %v892 = vsub.f32 %v828, 1.0
        %v893 = vsub.f32 %v829, 1.0
        %v894 = vsub.f32 %v830, 1.0
        %v895 = vsub.f32 %v831, 1.0
        %v896 = vsub.f32 %v832, 1.0
        %v897 = vsub.f32 %v833, 1.0
        %v898 = vsub.f32 %v834, 1.0
        %v899 = vsub.f32 %v835, 1.0
        %v900 = vsub.f32 %v836, 1.0
        %v901 = vsub.f32 %v837, 1.0
        %v902 = vsub.f32 %v838, 1.0
        %v903 = vsub.f32 %v839, 1.0
        %v904 = vsub.f32 %v840, 1.0
        %v905 = vsub.f32 %v841, 1.0
        %v906 = vsub.f32 %v842, 1.0
        %v907 = vsub.f32 %v843, 1.0
        %v908 = vsub.f32 %v844, 1.0
        %v909 = vsub.f32 %v845, 1.0
        %910 = vst [vmem:[%s109] sm:$0xff] %v878
        %911 = vst [vmem:[%s109 + $0x8] sm:$0xff] %v879
        %912 = vst [vmem:[%s109 + $0x10] sm:$0xff] %v880
        %913 = vst [vmem:[%s109 + $0x18] sm:$0xff] %v881
        %914 = vst [vmem:[%s109 + $0x20] sm:$0xff] %v882
        %915 = vst [vmem:[%s109 + $0x28] sm:$0xff] %v883
        %916 = vst [vmem:[%s109 + $0x30] sm:$0xff] %v884
        %917 = vst [vmem:[%s109 + $0x38] sm:$0xff] %v885
        %918 = vst [vmem:[%s109 + $0x40] sm:$0xff] %v886
        %919 = vst [vmem:[%s109 + $0x48] sm:$0xff] %v887
        %920 = vst [vmem:[%s109 + $0x50] sm:$0xff] %v888
        %921 = vst [vmem:[%s109 + $0x58] sm:$0xff] %v889
        %922 = vst [vmem:[%s109 + $0x60] sm:$0xff] %v890
        %923 = vst [vmem:[%s109 + $0x68] sm:$0xff] %v891
        %924 = vst [vmem:[%s109 + $0x70] sm:$0xff] %v892
        %925 = vst [vmem:[%s109 + $0x78] sm:$0xff] %v893
        %926 = vst [vmem:[%s109 + $0x80] sm:$0xff] %v894
        %927 = vst [vmem:[%s109 + $0x88] sm:$0xff] %v895
        %928 = vst [vmem:[%s109 + $0x90] sm:$0xff] %v896
        %929 = vst [vmem:[%s109 + $0x98] sm:$0xff] %v897
        %930 = vst [vmem:[%s109 + $0xa0] sm:$0xff] %v898
        %931 = vst [vmem:[%s109 + $0xa8] sm:$0xff] %v899
        %932 = vst [vmem:[%s109 + $0xb0] sm:$0xff] %v900
        %933 = vst [vmem:[%s109 + $0xb8] sm:$0xff] %v901
        %934 = vst [vmem:[%s109 + $0xc0] sm:$0xff] %v902
        %935 = vst [vmem:[%s109 + $0xc8] sm:$0xff] %v903
        %936 = vst [vmem:[%s109 + $0xd0] sm:$0xff] %v904
        %937 = vst [vmem:[%s109 + $0xd8] sm:$0xff] %v905
        %938 = vst [vmem:[%s109 + $0xe0] sm:$0xff] %v906
        %939 = vst [vmem:[%s109 + $0xe8] sm:$0xff] %v907
        %940 = vst [vmem:[%s109 + $0xf0] sm:$0xff] %v908
        %941 = vst [vmem:[%s109 + $0xf8] sm:$0xff] %v909
        %s942 = sand.u32 %s59, 1
        %s943 = scalar_lea.sflag [#allocation4], %s942
        %s944 = sand.u32 %s59, 1
        %s945 = smul.addr %s944, 256
        %s946 = scalar_lea.vmem [#allocation3], %s945
        // Predicated region
        $region25: #{tpu_custom_call.1} parent=23 // pred_check
          %p947 = pneg %p69
        $region26: #{tpu_custom_call.1} parent=23 // pred_check_branch
          %949 = sbr.rel (%p947) target = $region28
        $region27: #{tpu_custom_call.1} parent=23 // pred_region
          %s950 = smul.u32 16, %s20
          %s951 = smul.u32 2, %s21
          %s953 = ssub.s32 4096, 4096
          %954 = vsyncadd %s943, %s953
          %s955 = smul.addr %s950, 4
          %s956 = sadd.s32 %s951, %s955
          %s957 = smul.addr %s956, 128
          %s958 = scalar_lea.hbm %s1, %s957
          %s959 = sshll.u32 %s946, 4
          %s960 = int_to_ptr.vmem [resolvable:$true] %s959
          %965 = dma.vmem_to_hbm [thread:$0]  %s960, 4096, %s958, %s943, 256, 512, 16
        $region28: #{tpu_custom_call.1} parent=23 // pred_fallthru
          _
      $region24: #{tpu_custom_call.1} parent=5 // pred_fallthru
        _
      %p966 = scmp.le.s32.totalorder 2, %s11
      // Predicated region
      $region29: #{tpu_custom_call.1} parent=5 // pred_check
        %p967 = pneg %p966
      $region30: #{tpu_custom_call.1} parent=5 // pred_check_branch
        %969 = sbr.rel (%p967) target = $region32
      $region31: #{tpu_custom_call.1} parent=5 // pred_region
        %s970 = ssub.s32 %s11, 2
        // Predicated region
        $region33: #{tpu_custom_call.1} parent=31 // pred_check
          %p971 = pneg %p75
        $region34: #{tpu_custom_call.1} parent=31 // pred_check_branch
          %973 = sbr.rel (%p971) target = $region36
        $region35: #{tpu_custom_call.1} parent=31 // pred_region
          %s974 = sand.u32 %s60, 1
          %s975 = scalar_lea.sflag [#allocation4], %s974
          %s976 = sand.u32 %s60, 1
          %s977 = smul.addr %s976, 256
          %s978 = scalar_lea.vmem [#allocation3], %s977
          %979 = dma.done %s975, 4096
        $region36: #{tpu_custom_call.1} parent=31 // pred_fallthru
          _
      $region32: #{tpu_custom_call.1} parent=5 // pred_fallthru
        _
    $region6: #{tpu_custom_call.1} parent=1 // loop_footer
      %s15 = sadd.s32 1, %s11
    $region7: #{tpu_custom_call.1} parent=1 // loop_footer_branch
      %10 = sbr.rel target = $region3
    $region8: #{tpu_custom_call.1} parent=1 // loop_exit
      _
    %980 = vsyncpa [#allocation4], 1
    %s981 = scalar_lea.sflag [#allocation4], 1
    %982 = vsyncpa %s981, 1

</llo_original>
